<compile_context>
chip_gen: v7x
topology: tpu7x:2x2x1
jax: 0.10.0
libtpu: 0.0.40
codegen_flags: <defaults>
</compile_context>

<pallas_src>
import functools
import math

import numpy as np
import jax
import jax.numpy as jnp
from jax.experimental import pallas as pl
from jax.experimental.pallas import tpu as pltpu


DEFAULT_MASK_VALUE = -0.7 * float(np.finfo(np.float32).max)
VMEM_LIMIT = 48 * 1024 * 1024      # <= v7x 64 MiB physical, fine on v5e/v6e (128 MiB)


# ---------------------------------------------------------------------------
# Tiling helpers
# ---------------------------------------------------------------------------
def _pick_seq_tile(seq_len, prefs=(512, 256, 128, 64, 32, 16, 8)):
    """Largest preferred tile that divides seq_len; fall back to the full sequence."""
    for p in prefs:
        if p <= seq_len and seq_len % p == 0:
            return p
    return seq_len


def _pick_heads_per_group(n_rope_heads, total_heads, head_dim, max_lanes=1024):
    """Widest head chunk that (a) divides both the q+k section and the total head
    count (so each chunk is entirely RoPE or entirely no-RoPE) and (b) keeps the
    lane width <= max_lanes."""
    limit = math.gcd(n_rope_heads, total_heads)
    best = 1
    for d in range(1, limit + 1):
        if limit % d == 0 and d * head_dim <= max_lanes:
            best = d
    return best


def _largest_divisor_leq(n, cap):
    best = 1
    for d in range(1, min(n, cap) + 1):
        if n % d == 0:
            best = d
    return best


# ---------------------------------------------------------------------------
# 1) Fused QKV projection + multimodal RoPE (group-level RoPE branch)
# ---------------------------------------------------------------------------
def _qkv_rope_kernel(x_ref, w_ref, b_ref, cos_ref, sin_ref, o_ref, *,
                     head_dim, heads_per_group, n_rope_groups):
    D = head_dim
    half = D // 2
    # (ts, K) @ (K, heads_per_group*D) on the MXU, f32 accumulation, bias added once.
    acc = jnp.dot(x_ref[0], w_ref[0], preferred_element_type=jnp.float32)
    acc = acc + b_ref[0].astype(jnp.float32)

    g = pl.program_id(2)

    @pl.when(g < n_rope_groups)            # q and k head groups: apply RoPE (f32 math)
    def _():
        cos = cos_ref[0].astype(jnp.float32)   # (ts, D), shared by every head
        sin = sin_ref[0].astype(jnp.float32)   # (ts, D), pre-multiplied by rotate sign
        for i in range(heads_per_group):       # static unroll
            chunk = acc[:, i * D:(i + 1) * D]  # (ts, D) static slice
            if D % 128 == 0:
                rot = pltpu.roll(chunk, shift=half, axis=1)   # XLU lane rotate
            else:
                # small head_dim (toy config): swap halves with static slices
                rot = jnp.concatenate([chunk[:, half:], chunk[:, :half]], axis=1)
            o_ref[0, i] = (chunk * cos + rot * sin).astype(o_ref.dtype)

    @pl.when(g >= n_rope_groups)           # v head groups: plain projection
    def _():
        for i in range(heads_per_group):
            o_ref[0, i] = acc[:, i * D:(i + 1) * D].astype(o_ref.dtype)


def pallas_qkv_rope_proj(x, w_groups, b_groups, cos, sin_signed, *,
                         head_dim, heads_per_group, n_rope_groups, seq_tile):
    """x: (B,S,K) bf16. w_groups: (G,K,hpg*D) bf16. b_groups: (G,1,hpg*D) f32.
    cos/sin: (B,S,D) f32. Returns fused qkv (B, G*hpg, S, D) — q heads, then k, then v."""
    B, S, K = x.shape
    G = w_groups.shape[0]
    chunk = w_groups.shape[2]
    ts = seq_tile
    total_heads = G * heads_per_group

    kernel = functools.partial(_qkv_rope_kernel, head_dim=head_dim,
                               heads_per_group=heads_per_group,
                               n_rope_groups=n_rope_groups)
    return pl.pallas_call(
        kernel,
        out_shape=jax.ShapeDtypeStruct((B, total_heads, S, head_dim), x.dtype),
        grid_spec=pltpu.PrefetchScalarGridSpec(
            num_scalar_prefetch=0,
            grid=(B, S // ts, G),      # head-group innermost: x/cos/sin blocks reused
            in_specs=[
                pl.BlockSpec((1, ts, K), lambda b, si, g: (b, si, 0)),
                pl.BlockSpec((1, K, chunk), lambda b, si, g: (g, 0, 0)),
                pl.BlockSpec((1, 1, chunk), lambda b, si, g: (g, 0, 0)),
                pl.BlockSpec((1, ts, head_dim), lambda b, si, g: (b, si, 0)),
                pl.BlockSpec((1, ts, head_dim), lambda b, si, g: (b, si, 0)),
            ],
            out_specs=pl.BlockSpec((1, heads_per_group, ts, head_dim),
                                   lambda b, si, g: (b, g, si, 0)),
        ),
        compiler_params=pltpu.CompilerParams(
            dimension_semantics=("parallel", "parallel", "parallel"),
            vmem_limit_bytes=VMEM_LIMIT),
    )(x, w_groups, b_groups, cos, sin_signed)


# ---------------------------------------------------------------------------
# 2) Flash attention, GQA group-blocked (one K/V tile per group of query heads)
# ---------------------------------------------------------------------------
def _flash_attn_kernel(q_ref, k_ref, v_ref, o_ref, m_sc, l_sc, acc_sc, *,
                       groups, q_tile, kv_tile):
    qi = pl.program_id(2)
    kv = pl.program_id(3)

    @pl.when(kv == 0)
    def _():
        # DEFAULT_MASK_VALUE (not -inf): causal guarantees every query row sees at
        # least one valid key in its first processed block, and finite init avoids
        # inf-inf NaNs if masks are ever extended.
        m_sc[...] = jnp.full(m_sc.shape, DEFAULT_MASK_VALUE, dtype=jnp.float32)
        l_sc[...] = jnp.zeros(l_sc.shape, jnp.float32)
        acc_sc[...] = jnp.zeros(acc_sc.shape, jnp.float32)

    q_start = qi * q_tile
    k_start = kv * kv_tile

    # Skip kv blocks that lie entirely above the causal diagonal (DMA already
    # skipped via the clamped index_map).
    @pl.when(k_start <= q_start + (q_tile - 1))
    def _():
        k = k_ref[0, 0]                     # (tk, D) resident for the whole group
        v = v_ref[0, 0]                     # (tk, D)
        row = q_start + jax.lax.broadcasted_iota(jnp.int32, (q_tile, kv_tile), 0)
        col = k_start + jax.lax.broadcasted_iota(jnp.int32, (q_tile, kv_tile), 1)
        causal = col <= row                 # shared by every query head in the group

        for g in range(groups):             # static unroll over the GQA group
            q = q_ref[0, g]                 # (tq, D); 1/sqrt(D) already folded in
            s = jax.lax.dot_general(        # q @ k^T without materializing k.T
                q, k, (((1,), (1,)), ((), ())),
                preferred_element_type=jnp.float32)          # (tq, tk) f32
            s = jnp.where(causal, s, DEFAULT_MASK_VALUE)

            m_prev = m_sc[g]
            m_new = jnp.maximum(m_prev, jnp.max(s, axis=-1, keepdims=True))
            alpha = jnp.exp(m_prev - m_new)
            p = jnp.exp(s - m_new)
            l_sc[g] = alpha * l_sc[g] + jnp.sum(p, axis=-1, keepdims=True)
            acc_sc[g] = alpha * acc_sc[g] + jnp.dot(
                p.astype(v.dtype), v, preferred_element_type=jnp.float32)
            m_sc[g] = m_new

    @pl.when(kv == pl.num_programs(3) - 1)
    def _():
        o_ref[0] = (acc_sc[...] *
                    pl.reciprocal(l_sc[...], approx=True)).astype(o_ref.dtype)


def pallas_flash_attention(qkv, *, num_heads, num_kv_heads, head_dim, q_tile, kv_tile):
    """qkv: (B, H+2*Hkv, S, D) fused tensor (q heads, then k heads, then v heads).
    Returns attention output (B, H, S, D)."""
    B, total_heads, S, D = qkv.shape
    H, Hkv = num_heads, num_kv_heads
    groups = H // Hkv
    tq, tk = q_tile, kv_tile

    def q_map(b, h, qi, kv):            # block of `groups` query heads of kv-head h
        return (b, h, qi, 0)

    def k_map(b, h, qi, kv):            # clamp: masked kv steps reuse the last valid
        kv_eff = jnp.minimum(kv, (qi * tq + tq - 1) // tk)   # block -> DMA skipped
        return (b, H + h, kv_eff, 0)

    def v_map(b, h, qi, kv):
        kv_eff = jnp.minimum(kv, (qi * tq + tq - 1) // tk)
        return (b, H + Hkv + h, kv_eff, 0)

    kernel = functools.partial(_flash_attn_kernel, groups=groups,
                               q_tile=tq, kv_tile=tk)
    return pl.pallas_call(
        kernel,
        out_shape=jax.ShapeDtypeStruct((B, H, S, D), qkv.dtype),
        grid_spec=pltpu.PrefetchScalarGridSpec(
            num_scalar_prefetch=0,
            grid=(B, Hkv, S // tq, S // tk),
            in_specs=[
                pl.BlockSpec((1, groups, tq, D), q_map),
                pl.BlockSpec((1, 1, tk, D), k_map),
                pl.BlockSpec((1, 1, tk, D), v_map),
            ],
            out_specs=pl.BlockSpec((1, groups, tq, D),
                                   lambda b, h, qi, kv: (b, h, qi, 0)),
            scratch_shapes=[
                pltpu.VMEM((groups, tq, 1), jnp.float32),    # running max
                pltpu.VMEM((groups, tq, 1), jnp.float32),    # running denominator
                pltpu.VMEM((groups, tq, D), jnp.float32),    # output accumulator
            ],
        ),
        compiler_params=pltpu.CompilerParams(
            dimension_semantics=("parallel", "parallel", "parallel", "arbitrary"),
            vmem_limit_bytes=VMEM_LIMIT),
    )(qkv, qkv, qkv)


# ---------------------------------------------------------------------------
# 3) Output projection: head axis as reduction, several heads per step
# ---------------------------------------------------------------------------
def _oproj_kernel(a_ref, w_ref, o_ref, acc_ref, *, heads_per_step):
    h = pl.program_id(2)

    @pl.when(h == 0)
    def _():
        acc_ref[...] = jnp.zeros(acc_ref.shape, jnp.float32)

    upd = jnp.dot(a_ref[0, 0], w_ref[0], preferred_element_type=jnp.float32)
    for i in range(1, heads_per_step):     # static unroll: hp accumulating dots/step
        upd = upd + jnp.dot(a_ref[0, i], w_ref[i], preferred_element_type=jnp.float32)
    acc_ref[...] += upd

    @pl.when(h == pl.num_programs(2) - 1)
    def _():
        o_ref[0] = acc_ref[...].astype(o_ref.dtype)


def pallas_oproj(attn, w_heads, *, seq_tile, heads_per_step):
    """attn: (B, H, S, D) bf16; w_heads: (H, D, hidden) bf16. Returns (B, S, hidden)."""
    B, H, S, D = attn.shape
    N = w_heads.shape[2]
    ts = seq_tile
    hp = heads_per_step
    kernel = functools.partial(_oproj_kernel, heads_per_step=hp)
    return pl.pallas_call(
        kernel,
        out_shape=jax.ShapeDtypeStruct((B, S, N), attn.dtype),
        grid_spec=pltpu.PrefetchScalarGridSpec(
            num_scalar_prefetch=0,
            grid=(B, S // ts, H // hp),    # head axis = reduction -> innermost
            in_specs=[
                pl.BlockSpec((1, hp, ts, D), lambda b, si, h: (b, h, si, 0)),
                pl.BlockSpec((hp, D, N), lambda b, si, h: (h, 0, 0)),
            ],
            out_specs=pl.BlockSpec((1, ts, N), lambda b, si, h: (b, si, 0)),
            scratch_shapes=[pltpu.VMEM((ts, N), jnp.float32)],
        ),
        compiler_params=pltpu.CompilerParams(
            dimension_semantics=("parallel", "parallel", "arbitrary"),
            vmem_limit_bytes=VMEM_LIMIT),
    )(attn, w_heads)


# ---------------------------------------------------------------------------
# JAX glue: rotary table + mrope section merge (tiny tensors)
# ---------------------------------------------------------------------------
def qwen25vl_rotary_emb(position_ids, head_dim, rope_theta=10000.0, dtype=jnp.float32):
    """position_ids: (3, B, S). Returns cos, sin of shape (3, B, S, head_dim)."""
    inv_freq = 1.0 / (rope_theta ** (jnp.arange(0, head_dim, 2, dtype=jnp.float32)
                                     / head_dim))
    freqs = position_ids[..., None].astype(jnp.float32) * inv_freq[None, None, None, :]
    emb = jnp.concatenate([freqs, freqs], axis=-1)            # (3, B, S, D)
    attention_scaling = 1.0                                    # default rope type
    return (jnp.cos(emb) * attention_scaling).astype(dtype), \
           (jnp.sin(emb) * attention_scaling).astype(dtype)


def merge_mrope(x, mrope_section):
    """x: (3, B, S, D). Pick channel chunks from temporal/height/width per mrope_section."""
    sec2 = list(mrope_section) * 2
    split_pts = np.cumsum(sec2)[:-1].tolist()
    chunks = jnp.split(x, split_pts, axis=-1)
    parts = [chunks[i][i % 3] for i in range(len(chunks))]
    return jnp.concatenate(parts, axis=-1)                     # (B, S, D)


# ---------------------------------------------------------------------------
# Module wrapper
# ---------------------------------------------------------------------------
class Qwen25VLAttentionPallas:
    def __init__(self, hidden_size, num_heads, num_kv_heads, mrope_section,
                 rope_theta=10000.0, param_dtype=jnp.float32,
                 compute_dtype=jnp.bfloat16, seed=0):
        self.hidden_size = hidden_size
        self.num_heads = num_heads
        self.num_kv_heads = num_kv_heads
        self.num_kv_groups = num_heads // num_kv_heads
        self.head_dim = hidden_size // num_heads
        self.mrope_section = mrope_section
        self.rope_theta = rope_theta
        self.param_dtype = param_dtype
        self.compute_dtype = compute_dtype

        key = jax.random.PRNGKey(seed)
        ks = jax.random.split(key, 7)
        s = 0.02
        kv_out = num_kv_heads * self.head_dim
        # PyTorch nn.Linear layout: weight (out, in), bias (out,)
        self.q_w = (s * jax.random.normal(ks[0], (hidden_size, hidden_size))).astype(param_dtype)
        self.q_b = (s * jax.random.normal(ks[1], (hidden_size,))).astype(param_dtype)
        self.k_w = (s * jax.random.normal(ks[2], (kv_out, hidden_size))).astype(param_dtype)
        self.k_b = (s * jax.random.normal(ks[3], (kv_out,))).astype(param_dtype)
        self.v_w = (s * jax.random.normal(ks[4], (kv_out, hidden_size))).astype(param_dtype)
        self.v_b = (s * jax.random.normal(ks[5], (kv_out,))).astype(param_dtype)
        self.o_w = (s * jax.random.normal(ks[6], (hidden_size, hidden_size))).astype(param_dtype)

        self._prepare_fused_weights()

    def _prepare_fused_weights(self):
        H, Hkv, D, K = self.num_heads, self.num_kv_heads, self.head_dim, self.hidden_size
        cd = self.compute_dtype
        total_heads = H + 2 * Hkv
        n_rope_heads = H + Hkv
        inv_sqrt_d = 1.0 / math.sqrt(D)
        # Fold the 1/sqrt(D) attention scale into the q projection
        # (RoPE is linear: rope(q/sqrt(D)) == rope(q)/sqrt(D)).
        wq_t = self.q_w.T.astype(jnp.float32) * inv_sqrt_d
        bq = self.q_b.astype(jnp.float32) * inv_sqrt_d
        w_cat = jnp.concatenate([wq_t, self.k_w.T.astype(jnp.float32),
                                 self.v_w.T.astype(jnp.float32)], axis=1)   # (K, total*D)
        b_cat = jnp.concatenate([bq, self.k_b.astype(jnp.float32),
                                 self.v_b.astype(jnp.float32)], axis=0)     # (total*D,)

        self.total_heads = total_heads
        self.heads_per_group = _pick_heads_per_group(n_rope_heads, total_heads, D)
        assert n_rope_heads % self.heads_per_group == 0
        assert total_heads % self.heads_per_group == 0
        self.n_rope_groups = n_rope_heads // self.heads_per_group
        G = total_heads // self.heads_per_group
        chunk = self.heads_per_group * D
        # bf16 operand weights (f32 accumulation happens in-kernel); bias kept f32.
        self.w_qkv_groups = jnp.transpose(
            w_cat.reshape(K, G, chunk), (1, 0, 2)).astype(cd)               # (G,K,chunk)
        self.b_qkv_groups = b_cat.reshape(G, 1, chunk).astype(jnp.float32)  # (G,1,chunk)
        # o_proj: torch (hidden, H*D) -> per-head slabs of W^T : (H, D, hidden)
        self.o_w_heads = self.o_w.T.reshape(H, D, self.hidden_size).astype(cd)
        # heads contracted per o_proj grid step
        self.oproj_heads_per_step = _largest_divisor_leq(H, 4)

    def __call__(self, hidden_states, attention_mask=None, position_ids=None):
        # TODO(synk): only the standard causal mask is supported (generated in-kernel);
        # arbitrary additive attention_mask, KV-cache update and dropout>0 are not
        # implemented (dropout is 0.0 at eval in the reference module).
        if attention_mask is not None:
            raise NotImplementedError(
                "Qwen25VLAttentionPallas only supports attention_mask=None "
                "(causal mask is generated in-kernel).")
        in_dtype = hidden_states.dtype
        B, S, _ = hidden_states.shape
        H, Hkv, D = self.num_heads, self.num_kv_heads, self.head_dim
        half = D // 2

        # Rotary table + mrope section merge (tiny tensors; plain JAX, f32).
        cos, sin = qwen25vl_rotary_emb(position_ids, D, self.rope_theta, jnp.float32)
        cos_m = merge_mrope(cos, self.mrope_section)                       # (B, S, D)
        sin_m = merge_mrope(sin, self.mrope_section)
        # Pre-fold the rotate_half sign: rotate_half(x) == sign * swap_halves(x).
        sign = jnp.concatenate([-jnp.ones((half,), jnp.float32),
                                jnp.ones((half,), jnp.float32)])
        sin_s = sin_m * sign

        # Per-kernel tile sizes (flash capped at 256 for v5e vreg pressure; QKV /
        # o_proj tiles larger to cut weight re-streaming).
        ts_qkv = _pick_seq_tile(S, prefs=(512, 256, 128, 64, 32, 16, 8))
        ts_o = _pick_seq_tile(S, prefs=(512, 256, 128, 64, 32, 16, 8))
        tq = tk = _pick_seq_tile(S, prefs=(256, 128, 64, 32, 16, 8))

        x = hidden_states.astype(self.compute_dtype)

        qkv = pallas_qkv_rope_proj(
            x, self.w_qkv_groups, self.b_qkv_groups, cos_m, sin_s,
            head_dim=D, heads_per_group=self.heads_per_group,
            n_rope_groups=self.n_rope_groups, seq_tile=ts_qkv)             # (B, H+2Hkv, S, D)

        attn = pallas_flash_attention(
            qkv, num_heads=H, num_kv_heads=Hkv, head_dim=D, q_tile=tq, kv_tile=tk)

        out = pallas_oproj(attn, self.o_w_heads, seq_tile=ts_o,
                           heads_per_step=self.oproj_heads_per_step)       # (B, S, hidden)
        return out.astype(in_dtype), None, None


# ---------------------------------------------------------------------------
# Pure-JAX reference (mirrors the PyTorch forward, f32) for a sanity check
# ---------------------------------------------------------------------------
def reference_forward(mod, hidden_states, position_ids):
    B, S, _ = hidden_states.shape
    H, Hkv, D = mod.num_heads, mod.num_kv_heads, mod.head_dim
    x = hidden_states.astype(jnp.float32)
    q = x @ mod.q_w.T.astype(jnp.float32) + mod.q_b.astype(jnp.float32)
    k = x @ mod.k_w.T.astype(jnp.float32) + mod.k_b.astype(jnp.float32)
    v = x @ mod.v_w.T.astype(jnp.float32) + mod.v_b.astype(jnp.float32)
    q = q.reshape(B, S, H, D).transpose(0, 2, 1, 3)
    k = k.reshape(B, S, Hkv, D).transpose(0, 2, 1, 3)
    v = v.reshape(B, S, Hkv, D).transpose(0, 2, 1, 3)
    cos, sin = qwen25vl_rotary_emb(position_ids, D, mod.rope_theta, jnp.float32)
    cos_m = merge_mrope(cos, mod.mrope_section)[:, None]     # (B,1,S,D)
    sin_m = merge_mrope(sin, mod.mrope_section)[:, None]

    def rot_half(t):
        return jnp.concatenate([-t[..., D // 2:], t[..., :D // 2]], axis=-1)

    q = q * cos_m + rot_half(q) * sin_m
    k = k * cos_m + rot_half(k) * sin_m
    k = jnp.repeat(k, H // Hkv, axis=1)
    v = jnp.repeat(v, H // Hkv, axis=1)
    s = jnp.einsum('bhqd,bhkd->bhqk', q, k) / math.sqrt(D)
    causal = jnp.where(jnp.arange(S)[None, :] <= jnp.arange(S)[:, None], 0.0, -jnp.inf)
    p = jax.nn.softmax(s + causal, axis=-1)
    o = jnp.einsum('bhqk,bhkd->bhqd', p, v)
    o = o.transpose(0, 2, 1, 3).reshape(B, S, H * D)
    return o @ mod.o_w.T.astype(jnp.float32)


if __name__ == "__main__":
    # Small config consistent with the module:
    B, S = 2, 16
    hidden_size = 64
    num_heads = 4
    num_kv_heads = 2
    head_dim = hidden_size // num_heads          # 16
    mrope_section = [2, 3, 3]                    # sums to head_dim // 2 = 8

    key = jax.random.PRNGKey(0)
    hidden_states = jax.random.normal(key, (B, S, hidden_size), dtype=jnp.float32)
    # mrope position ids (temporal/height/width identical -> text-like positions)
    pos = jnp.broadcast_to(jnp.arange(S, dtype=jnp.int32)[None, None, :], (3, B, S))

    attn = Qwen25VLAttentionPallas(hidden_size, num_heads, num_kv_heads,
                                   mrope_section, seed=0)
    out, _, _ = attn(hidden_states, None, pos)   # causal mask generated in-kernel
    out = jax.block_until_ready(out)
    assert out.shape == (B, S, hidden_size)

    ref = reference_forward(attn, hidden_states, pos)
    err = float(jnp.max(jnp.abs(out.astype(jnp.float32) - ref)))
    scale = float(jnp.max(jnp.abs(ref))) + 1e-6
    # bf16 operands + f32 accumulation vs f32 reference -> loosened tolerance
    assert err <= 2e-3 + 5e-2 * scale, f"mismatch: max_abs_err={err}, ref_scale={scale}"

    print("KERNEL_OK")
</pallas_src>

<mosaic_0001>
module attributes {stable_mosaic.version = 11 : i64} {
  func.func @_qkv_rope_kernel(%arg0: i32, %arg1: i32, %arg2: i32, %arg3: memref<1x16x64xbf16, #tpu.memory_space<vmem>>, %arg4: memref<1x64x32xbf16, #tpu.memory_space<vmem>>, %arg5: memref<1x1x32xf32, #tpu.memory_space<vmem>>, %arg6: memref<1x16x16xf32, #tpu.memory_space<vmem>>, %arg7: memref<1x16x16xf32, #tpu.memory_space<vmem>>, %arg8: memref<1x2x16x16xbf16, #tpu.memory_space<vmem>>) attributes {dimension_semantics = [#tpu.dimension_semantics<parallel>, #tpu.dimension_semantics<parallel>, #tpu.dimension_semantics<parallel>], iteration_bounds = array<i64: 2, 1, 4>, scalar_prefetch = 0 : i64, scratch_operands = 0 : i64, tpu.core_type = #tpu.core_type<tc>, window_params = [{transform_indices = @transform_0, window_bounds = array<i64: 1, 16, 64>}, {transform_indices = @transform_1, window_bounds = array<i64: 1, 64, 32>}, {transform_indices = @transform_2, window_bounds = array<i64: 1, 1, 32>}, {transform_indices = @transform_3, window_bounds = array<i64: 1, 16, 16>}, {transform_indices = @transform_4, window_bounds = array<i64: 1, 16, 16>}, {transform_indices = @transform_5, window_bounds = array<i64: 1, 2, 16, 16>}]} {
    %c0 = arith.constant 0 : index
    %c0_0 = arith.constant 0 : index
    %c0_1 = arith.constant 0 : index
    %0 = vector.load %arg3[%c0, %c0_0, %c0_1] : memref<1x16x64xbf16, #tpu.memory_space<vmem>>, vector<1x16x64xbf16>
    %1 = vector.shape_cast %0 : vector<1x16x64xbf16> to vector<16x64xbf16>
    %c0_2 = arith.constant 0 : index
    %c0_3 = arith.constant 0 : index
    %c0_4 = arith.constant 0 : index
    %2 = vector.load %arg4[%c0_2, %c0_3, %c0_4] : memref<1x64x32xbf16, #tpu.memory_space<vmem>>, vector<1x64x32xbf16>
    %3 = vector.shape_cast %2 : vector<1x64x32xbf16> to vector<64x32xbf16>
    %cst = arith.constant dense<0.000000e+00> : vector<16x32xf32>
    %4 = tpu.matmul %1, %3, %cst {dimension_numbers = #tpu.dot_dimension_numbers<[1], [0], [0], [1], [0, 0, 1, 1], [], []>} : vector<16x64xbf16>, vector<64x32xbf16>, vector<16x32xf32> -> vector<16x32xf32>
    %c0_5 = arith.constant 0 : index
    %c0_6 = arith.constant 0 : index
    %c0_7 = arith.constant 0 : index
    %5 = vector.load %arg5[%c0_5, %c0_6, %c0_7] : memref<1x1x32xf32, #tpu.memory_space<vmem>>, vector<1x1x32xf32>
    %6 = vector.shape_cast %5 : vector<1x1x32xf32> to vector<1x32xf32>
    %7 = vector.broadcast %6 : vector<1x32xf32> to vector<16x32xf32>
    %8 = arith.addf %4, %7 : vector<16x32xf32>
    %c3_i32 = arith.constant 3 : i32
    %9 = arith.cmpi slt, %arg2, %c3_i32 : i32
    %10 = arith.extui %9 : i1 to i32
    %c0_i32 = arith.constant 0 : i32
    %11 = arith.cmpi ne, %10, %c0_i32 : i32
    scf.if %11 {
      %c0_10 = arith.constant 0 : index
      %c0_11 = arith.constant 0 : index
      %c0_12 = arith.constant 0 : index
      %15 = vector.load %arg6[%c0_10, %c0_11, %c0_12] : memref<1x16x16xf32, #tpu.memory_space<vmem>>, vector<1x16x16xf32>
      %16 = vector.shape_cast %15 : vector<1x16x16xf32> to vector<16x16xf32>
      %c0_13 = arith.constant 0 : index
      %c0_14 = arith.constant 0 : index
      %c0_15 = arith.constant 0 : index
      %17 = vector.load %arg7[%c0_13, %c0_14, %c0_15] : memref<1x16x16xf32, #tpu.memory_space<vmem>>, vector<1x16x16xf32>
      %18 = vector.shape_cast %17 : vector<1x16x16xf32> to vector<16x16xf32>
      %19 = vector.extract_strided_slice %8 {offsets = [0, 0], sizes = [16, 16], strides = [1, 1]} : vector<16x32xf32> to vector<16x16xf32>
      %20 = vector.extract_strided_slice %19 {offsets = [0, 8], sizes = [16, 8], strides = [1, 1]} : vector<16x16xf32> to vector<16x8xf32>
      %21 = vector.extract_strided_slice %19 {offsets = [0, 0], sizes = [16, 8], strides = [1, 1]} : vector<16x16xf32> to vector<16x8xf32>
      %22 = tpu.concatenate %20, %21 in 1 : vector<16x8xf32>, vector<16x8xf32> -> vector<16x16xf32>
      %23 = arith.mulf %19, %16 : vector<16x16xf32>
      %24 = arith.mulf %22, %18 : vector<16x16xf32>
      %25 = arith.addf %23, %24 : vector<16x16xf32>
      %26 = arith.truncf %25 : vector<16x16xf32> to vector<16x16xbf16>
      %c0_16 = arith.constant 0 : index
      %c0_17 = arith.constant 0 : index
      %c0_18 = arith.constant 0 : index
      %c0_19 = arith.constant 0 : index
      %27 = vector.load %arg8[%c0_16, %c0_17, %c0_18, %c0_19] : memref<1x2x16x16xbf16, #tpu.memory_space<vmem>>, vector<1x1x16x16xbf16>
      %28 = vector.shape_cast %27 : vector<1x1x16x16xbf16> to vector<16x16xbf16>
      %29 = vector.shape_cast %26 : vector<16x16xbf16> to vector<1x1x16x16xbf16>
      tpu.vector_store %arg8[%c0_16, %c0_17, %c0_18, %c0_19], %29 {strides = array<i32>} : memref<1x2x16x16xbf16, #tpu.memory_space<vmem>>, vector<1x1x16x16xbf16>,
      %30 = vector.extract_strided_slice %8 {offsets = [0, 16], sizes = [16, 16], strides = [1, 1]} : vector<16x32xf32> to vector<16x16xf32>
      %31 = vector.extract_strided_slice %30 {offsets = [0, 8], sizes = [16, 8], strides = [1, 1]} : vector<16x16xf32> to vector<16x8xf32>
      %32 = vector.extract_strided_slice %30 {offsets = [0, 0], sizes = [16, 8], strides = [1, 1]} : vector<16x16xf32> to vector<16x8xf32>
      %33 = tpu.concatenate %31, %32 in 1 : vector<16x8xf32>, vector<16x8xf32> -> vector<16x16xf32>
      %34 = arith.mulf %30, %16 : vector<16x16xf32>
      %35 = arith.mulf %33, %18 : vector<16x16xf32>
      %36 = arith.addf %34, %35 : vector<16x16xf32>
      %37 = arith.truncf %36 : vector<16x16xf32> to vector<16x16xbf16>
      %c0_20 = arith.constant 0 : index
      %c1 = arith.constant 1 : index
      %c0_21 = arith.constant 0 : index
      %c0_22 = arith.constant 0 : index
      %38 = vector.load %arg8[%c0_20, %c1, %c0_21, %c0_22] : memref<1x2x16x16xbf16, #tpu.memory_space<vmem>>, vector<1x1x16x16xbf16>
      %39 = vector.shape_cast %38 : vector<1x1x16x16xbf16> to vector<16x16xbf16>
      %40 = vector.shape_cast %37 : vector<16x16xbf16> to vector<1x1x16x16xbf16>
      tpu.vector_store %arg8[%c0_20, %c1, %c0_21, %c0_22], %40 {strides = array<i32>} : memref<1x2x16x16xbf16, #tpu.memory_space<vmem>>, vector<1x1x16x16xbf16>,
    } else {
    }
    %c3_i32_8 = arith.constant 3 : i32
    %12 = arith.cmpi sge, %arg2, %c3_i32_8 : i32
    %13 = arith.extui %12 : i1 to i32
    %c0_i32_9 = arith.constant 0 : i32
    %14 = arith.cmpi ne, %13, %c0_i32_9 : i32
    scf.if %14 {
      %15 = vector.extract_strided_slice %8 {offsets = [0, 0], sizes = [16, 16], strides = [1, 1]} : vector<16x32xf32> to vector<16x16xf32>
      %16 = arith.truncf %15 : vector<16x16xf32> to vector<16x16xbf16>
      %c0_10 = arith.constant 0 : index
      %c0_11 = arith.constant 0 : index
      %c0_12 = arith.constant 0 : index
      %c0_13 = arith.constant 0 : index
      %17 = vector.load %arg8[%c0_10, %c0_11, %c0_12, %c0_13] : memref<1x2x16x16xbf16, #tpu.memory_space<vmem>>, vector<1x1x16x16xbf16>
      %18 = vector.shape_cast %17 : vector<1x1x16x16xbf16> to vector<16x16xbf16>
      %19 = vector.shape_cast %16 : vector<16x16xbf16> to vector<1x1x16x16xbf16>
      tpu.vector_store %arg8[%c0_10, %c0_11, %c0_12, %c0_13], %19 {strides = array<i32>} : memref<1x2x16x16xbf16, #tpu.memory_space<vmem>>, vector<1x1x16x16xbf16>,
      %20 = vector.extract_strided_slice %8 {offsets = [0, 16], sizes = [16, 16], strides = [1, 1]} : vector<16x32xf32> to vector<16x16xf32>
      %21 = arith.truncf %20 : vector<16x16xf32> to vector<16x16xbf16>
      %c0_14 = arith.constant 0 : index
      %c1 = arith.constant 1 : index
      %c0_15 = arith.constant 0 : index
      %c0_16 = arith.constant 0 : index
      %22 = vector.load %arg8[%c0_14, %c1, %c0_15, %c0_16] : memref<1x2x16x16xbf16, #tpu.memory_space<vmem>>, vector<1x1x16x16xbf16>
      %23 = vector.shape_cast %22 : vector<1x1x16x16xbf16> to vector<16x16xbf16>
      %24 = vector.shape_cast %21 : vector<16x16xbf16> to vector<1x1x16x16xbf16>
      tpu.vector_store %arg8[%c0_14, %c1, %c0_15, %c0_16], %24 {strides = array<i32>} : memref<1x2x16x16xbf16, #tpu.memory_space<vmem>>, vector<1x1x16x16xbf16>,
    } else {
    }
    return
  }
  func.func @transform_0(%arg0: i32, %arg1: i32, %arg2: i32) -> (i32, i32, i32) {
    %c0_i32 = arith.constant 0 : i32
    %c0_i32_0 = arith.constant 0 : i32
    return %arg0, %arg1, %c0_i32 : i32, i32, i32
  }
  func.func @transform_1(%arg0: i32, %arg1: i32, %arg2: i32) -> (i32, i32, i32) {
    %c0_i32 = arith.constant 0 : i32
    %c0_i32_0 = arith.constant 0 : i32
    %c0_i32_1 = arith.constant 0 : i32
    return %arg2, %c0_i32, %c0_i32_0 : i32, i32, i32
  }
  func.func @transform_2(%arg0: i32, %arg1: i32, %arg2: i32) -> (i32, i32, i32) {
    %c0_i32 = arith.constant 0 : i32
    %c0_i32_0 = arith.constant 0 : i32
    %c0_i32_1 = arith.constant 0 : i32
    return %arg2, %c0_i32, %c0_i32_0 : i32, i32, i32
  }
  func.func @transform_3(%arg0: i32, %arg1: i32, %arg2: i32) -> (i32, i32, i32) {
    %c0_i32 = arith.constant 0 : i32
    %c0_i32_0 = arith.constant 0 : i32
    return %arg0, %arg1, %c0_i32 : i32, i32, i32
  }
  func.func @transform_4(%arg0: i32, %arg1: i32, %arg2: i32) -> (i32, i32, i32) {
    %c0_i32 = arith.constant 0 : i32
    %c0_i32_0 = arith.constant 0 : i32
    return %arg0, %arg1, %c0_i32 : i32, i32, i32
  }
  func.func @transform_5(%arg0: i32, %arg1: i32, %arg2: i32) -> (i32, i32, i32, i32) {
    %c0_i32 = arith.constant 0 : i32
    %c0_i32_0 = arith.constant 0 : i32
    return %arg0, %arg2, %arg1, %c0_i32 : i32, i32, i32, i32
  }
}

</mosaic_0001>

<llo_original>
// kernel: tpu_custom_call.1
$region0: #{tpu_custom_call.1}
  #allocation0 [shape = 'u32[]', space=smem, size = 0x4, offset = 0x4, fixed_abs, tag = 'smem constant byte address 0x4 - core index']
  #allocation1 [shape = 'u32[144,128]{1,0:T(1,128)}', space=vmem, size = 0x12000, scoped, tag = 'internal scratch']
  %s0 = inlined_call_operand.vmem [shape: bf16[2,16,64], index: 0, kind: input, shape index: {}]
  %s1 = inlined_call_operand.vmem [shape: bf16[4,64,32], index: 1, kind: input, shape index: {}]
  %s2 = inlined_call_operand.vmem [shape: f32[4,1,32], index: 2, kind: input, shape index: {}]
  %s3 = inlined_call_operand.vmem [shape: f32[2,16,16], index: 3, kind: input, shape index: {}]
  %s4 = inlined_call_operand.vmem [shape: f32[2,16,16], index: 4, kind: input, shape index: {}]
  %s5 = inlined_call_operand.hbm [shape: bf16[2,8,16,16], index: 5, kind: output, shape index: {}]
  %s6 = sld [smem:[#allocation0]]
  $region61: #{tpu_custom_call.1} parent=0
    _
  %s8 = ssub.s32 1, %s6
  %s9 = scalar_select 0, %s8, %s6
  $region1: #{tpu_custom_call.1} parent=0
    #allocation2 [shape = 'u8[16384]{0}', space=vmem, size = 0x4000, scoped, tag = 'output window, operand 0']
    #allocation3 [shape = 's32[2]{0}', space=sflag, size = 0x8, scoped, tag = 'scoped memory for tpu_custom_call.1']
    %10 = vsyncpa [#allocation3], 0
    %s11 = scalar_lea.sflag [#allocation3], 1
    %12 = vsyncpa %s11, 0
    loop: start=0, step=1, limit=10
    $region2: #{tpu_custom_call.1} parent=1 // loop_pre_header
      _
    $region3: #{tpu_custom_call.1} parent=1 // loop_header
      %s14 = sphi 0, %s18
      %p15 = scmp.ge.s32.totalorder %s14, 10
      %s21 = sphi 0, %s40
      %s22 = sphi 0, %s36
      %s23 = sphi 0, %s32
      %s24 = sphi 0, %s21
      %s25 = sphi 0, %s22
      %s26 = sphi 0, %s23
      %s27 = sphi 0, %s24
      %s28 = sphi 0, %s25
      %s29 = sphi 0, %s26
      %s45 = sphi 0, %s47
      %s48 = sphi 0, %s45
      %s49 = sphi 0, %s48
      %s65 = sphi 0, %s49
      %s71 = sphi 0, %s73
      %s74 = sphi 0, %s71
      %s75 = sphi 0, %s74
      %s91 = sphi 0, %s75
      %s97 = sphi 0, %s99
      %s100 = sphi 0, %s97
      %s101 = sphi 0, %s100
      %s117 = sphi 0, %s101
      %s125 = sphi 0, %s127
      %s128 = sphi 0, %s125
      %s129 = sphi 0, %s128
      %s145 = sphi 0, %s129
      %s153 = sphi 0, %s155
      %s156 = sphi 0, %s153
      %s157 = sphi 0, %s156
      %s173 = sphi 0, %s157
      %s183 = sphi 0, %s185
      %s186 = sphi 0, %s183
      %s187 = sphi 0, %s186
      %s203 = sphi 0, %s187
    $region4: #{tpu_custom_call.1} parent=1 // loop_header_branch
      %17 = sbr.rel (%p15) target = $region8
    $region5: #{tpu_custom_call.1} parent=1 // loop_body
      %s19 = ssub.s32 %s14, 1
      %s20 = ssub.s32 %s14, 2
      %s30 = sadd.s32 1, %s23
      %p31 = scmp.ge.s32.totalorder %s30, 4
      %s32 = scalar_select %p31, 0, %s30
      %s33 = sadd.s32 1, %s22
      %s34 = scalar_select %p31, %s33, %s22
      %p35 = scmp.ge.s32.totalorder %s34, 1
      %s36 = scalar_select %p35, 0, %s34
      %s37 = sadd.s32 1, %s21
      %s38 = scalar_select %p35, %s37, %s21
      %p39 = scmp.ge.s32.totalorder %s38, 2
      %s40 = scalar_select %p39, 0, %s38
      %s41 = ssub.s32 %s21, %s40
      %s42 = ssub.s32 %s22, %s36
      %s43 = sor.u32 %s41, %s42
      %p44 = scmp.eq.s32.totalorder %s43, 0
      %s46 = sadd.s32 %s45, 1
      %s47 = scalar_select %p44, %s45, %s46
      %p50 = pneg %p44
      %p51 = scmp.eq.s32.totalorder %s14, 7
      %p52 = por %p50, %p51
      %p53 = scmp.ne.s32.totalorder %s45, %s48
      %p54 = scmp.eq.s32.totalorder %s14, 0
      %p55 = por %p53, %p54
      %p56 = scmp.ne.s32.totalorder %s45, %s48
      %p57 = scmp.eq.s32.totalorder %s19, 7
      %p58 = por %p56, %p57
      %p59 = scmp.ne.s32.totalorder %s48, %s49
      %p60 = scmp.eq.s32.totalorder %s19, 0
      %p61 = por %p59, %p60
      %p62 = scmp.ne.s32.totalorder %s48, %s49
      %p63 = scmp.eq.s32.totalorder %s20, 7
      %p64 = por %p62, %p63
      %p66 = scmp.ne.s32.totalorder %s49, %s65
      %p67 = scmp.eq.s32.totalorder %s20, 0
      %p68 = por %p66, %p67
      %s69 = ssub.s32 %s23, %s32
      %p70 = scmp.eq.s32.totalorder %s69, 0
      %s72 = sadd.s32 %s71, 1
      %s73 = scalar_select %p70, %s71, %s72
      %p76 = pneg %p70
      %p77 = scmp.eq.s32.totalorder %s14, 7
      %p78 = por %p76, %p77
      %p79 = scmp.ne.s32.totalorder %s71, %s74
      %p80 = scmp.eq.s32.totalorder %s14, 0
      %p81 = por %p79, %p80
      %p82 = scmp.ne.s32.totalorder %s71, %s74
      %p83 = scmp.eq.s32.totalorder %s19, 7
      %p84 = por %p82, %p83
      %p85 = scmp.ne.s32.totalorder %s74, %s75
      %p86 = scmp.eq.s32.totalorder %s19, 0
      %p87 = por %p85, %p86
      %p88 = scmp.ne.s32.totalorder %s74, %s75
      %p89 = scmp.eq.s32.totalorder %s20, 7
      %p90 = por %p88, %p89
      %p92 = scmp.ne.s32.totalorder %s75, %s91
      %p93 = scmp.eq.s32.totalorder %s20, 0
      %p94 = por %p92, %p93
      %s95 = ssub.s32 %s23, %s32
      %p96 = scmp.eq.s32.totalorder %s95, 0
      %s98 = sadd.s32 %s97, 1
      %s99 = scalar_select %p96, %s97, %s98
      %p102 = pneg %p96
      %p103 = scmp.eq.s32.totalorder %s14, 7
      %p104 = por %p102, %p103
      %p105 = scmp.ne.s32.totalorder %s97, %s100
      %p106 = scmp.eq.s32.totalorder %s14, 0
      %p107 = por %p105, %p106
      %p108 = scmp.ne.s32.totalorder %s97, %s100
      %p109 = scmp.eq.s32.totalorder %s19, 7
      %p110 = por %p108, %p109
      %p111 = scmp.ne.s32.totalorder %s100, %s101
      %p112 = scmp.eq.s32.totalorder %s19, 0
      %p113 = por %p111, %p112
      %p114 = scmp.ne.s32.totalorder %s100, %s101
      %p115 = scmp.eq.s32.totalorder %s20, 7
      %p116 = por %p114, %p115
      %p118 = scmp.ne.s32.totalorder %s101, %s117
      %p119 = scmp.eq.s32.totalorder %s20, 0
      %p120 = por %p118, %p119
      %s121 = ssub.s32 %s21, %s40
      %s122 = ssub.s32 %s22, %s36
      %s123 = sor.u32 %s121, %s122
      %p124 = scmp.eq.s32.totalorder %s123, 0
      %s126 = sadd.s32 %s125, 1
      %s127 = scalar_select %p124, %s125, %s126
      %p130 = pneg %p124
      %p131 = scmp.eq.s32.totalorder %s14, 7
      %p132 = por %p130, %p131
      %p133 = scmp.ne.s32.totalorder %s125, %s128
      %p134 = scmp.eq.s32.totalorder %s14, 0
      %p135 = por %p133, %p134
      %p136 = scmp.ne.s32.totalorder %s125, %s128
      %p137 = scmp.eq.s32.totalorder %s19, 7
      %p138 = por %p136, %p137
      %p139 = scmp.ne.s32.totalorder %s128, %s129
      %p140 = scmp.eq.s32.totalorder %s19, 0
      %p141 = por %p139, %p140
      %p142 = scmp.ne.s32.totalorder %s128, %s129
      %p143 = scmp.eq.s32.totalorder %s20, 7
      %p144 = por %p142, %p143
      %p146 = scmp.ne.s32.totalorder %s129, %s145
      %p147 = scmp.eq.s32.totalorder %s20, 0
      %p148 = por %p146, %p147
      %s149 = ssub.s32 %s21, %s40
      %s150 = ssub.s32 %s22, %s36
      %s151 = sor.u32 %s149, %s150
      %p152 = scmp.eq.s32.totalorder %s151, 0
      %s154 = sadd.s32 %s153, 1
      %s155 = scalar_select %p152, %s153, %s154
      %p158 = pneg %p152
      %p159 = scmp.eq.s32.totalorder %s14, 7
      %p160 = por %p158, %p159
      %p161 = scmp.ne.s32.totalorder %s153, %s156
      %p162 = scmp.eq.s32.totalorder %s14, 0
      %p163 = por %p161, %p162
      %p164 = scmp.ne.s32.totalorder %s153, %s156
      %p165 = scmp.eq.s32.totalorder %s19, 7
      %p166 = por %p164, %p165
      %p167 = scmp.ne.s32.totalorder %s156, %s157
      %p168 = scmp.eq.s32.totalorder %s19, 0
      %p169 = por %p167, %p168
      %p170 = scmp.ne.s32.totalorder %s156, %s157
      %p171 = scmp.eq.s32.totalorder %s20, 7
      %p172 = por %p170, %p171
      %p174 = scmp.ne.s32.totalorder %s157, %s173
      %p175 = scmp.eq.s32.totalorder %s20, 0
      %p176 = por %p174, %p175
      %s177 = ssub.s32 %s21, %s40
      %s178 = ssub.s32 %s23, %s32
      %s179 = sor.u32 %s177, %s178
      %s180 = ssub.s32 %s22, %s36
      %s181 = sor.u32 %s179, %s180
      %p182 = scmp.eq.s32.totalorder %s181, 0
      %s184 = sadd.s32 %s183, 1
      %s185 = scalar_select %p182, %s183, %s184
      %p188 = pneg %p182
      %p189 = scmp.eq.s32.totalorder %s14, 7
      %p190 = por %p188, %p189
      %p191 = scmp.ne.s32.totalorder %s183, %s186
      %p192 = scmp.eq.s32.totalorder %s14, 0
      %p193 = por %p191, %p192
      %p194 = scmp.ne.s32.totalorder %s183, %s186
      %p195 = scmp.eq.s32.totalorder %s19, 7
      %p196 = por %p194, %p195
      %p197 = scmp.ne.s32.totalorder %s186, %s187
      %p198 = scmp.eq.s32.totalorder %s19, 0
      %p199 = por %p197, %p198
      %p200 = scmp.ne.s32.totalorder %s186, %s187
      %p201 = scmp.eq.s32.totalorder %s20, 7
      %p202 = por %p200, %p201
      %p204 = scmp.ne.s32.totalorder %s187, %s203
      %p205 = scmp.eq.s32.totalorder %s20, 0
      %p206 = por %p204, %p205
      %p207 = scmp.le.s32.totalorder 1, %s14
      %p208 = scmp.lt.s32.totalorder %s14, 9
      %p209 = pnand %p207, %p208
      %p210 = pneg %p209
      // Predicated region
      $region9: #{tpu_custom_call.1} parent=5 // pred_check
        _
      $region10: #{tpu_custom_call.1} parent=5 // pred_check_branch
        %212 = sbr.rel (%p209) target = $region12
      $region11: #{tpu_custom_call.1} parent=5 // pred_region
        %s213 = ssub.s32 %s14, 1
      $region12: #{tpu_custom_call.1} parent=5 // pred_fallthru
        _
      %p214 = scmp.lt.s32.totalorder %s14, 8
      // Predicated region
      $region13: #{tpu_custom_call.1} parent=5 // pred_check
        %p215 = pneg %p214
      $region14: #{tpu_custom_call.1} parent=5 // pred_check_branch
        %217 = sbr.rel (%p215) target = $region16
      $region15: #{tpu_custom_call.1} parent=5 // pred_region
        // Predicated region
        $region17: #{tpu_custom_call.1} parent=15 // pred_check
          %p218 = pneg %p55
        $region18: #{tpu_custom_call.1} parent=15 // pred_check_branch
          %220 = sbr.rel (%p218) target = $region20
        $region19: #{tpu_custom_call.1} parent=15 // pred_region
          %s221 = smul.u32 2, %s22
          %p222 = scmp.lt.s32.totalorder %s21, 1
          %s223 = scalar_select %p222, %s21, 1
          %p224 = scmp.lt.s32.totalorder %s221, 1
          %s225 = scalar_select %p224, %s221, 1
          %s226 = smul.addr %s223, 2
          %s227 = sadd.s32 %s225, %s226
          %s228 = smul.addr %s227, 4
          %s229 = scalar_lea.vmem %s0, %s228
          %s230 = smul.u32 2, %s22
        $region20: #{tpu_custom_call.1} parent=15 // pred_fallthru
          _
        // Predicated region
        $region21: #{tpu_custom_call.1} parent=15 // pred_check
          %p231 = pneg %p81
        $region22: #{tpu_custom_call.1} parent=15 // pred_check_branch
          %233 = sbr.rel (%p231) target = $region24
        $region23: #{tpu_custom_call.1} parent=15 // pred_region
          %p234 = scmp.lt.s32.totalorder %s23, 3
          %s235 = scalar_select %p234, %s23, 3
          %s236 = smul.addr %s235, 8
          %s237 = smul.addr %s236, 4
          %s238 = scalar_lea.vmem %s1, %s237
        $region24: #{tpu_custom_call.1} parent=15 // pred_fallthru
          _
        // Predicated region
        $region25: #{tpu_custom_call.1} parent=15 // pred_check
          %p239 = pneg %p107
        $region26: #{tpu_custom_call.1} parent=15 // pred_check_branch
          %241 = sbr.rel (%p239) target = $region28
        $region27: #{tpu_custom_call.1} parent=15 // pred_region
          %p242 = scmp.lt.s32.totalorder %s23, 3
          %s243 = scalar_select %p242, %s23, 3
          %s244 = scalar_lea.vmem %s2, %s243
        $region28: #{tpu_custom_call.1} parent=15 // pred_fallthru
          _
        // Predicated region
        $region29: #{tpu_custom_call.1} parent=15 // pred_check
          %p245 = pneg %p135
        $region30: #{tpu_custom_call.1} parent=15 // pred_check_branch
          %247 = sbr.rel (%p245) target = $region32
        $region31: #{tpu_custom_call.1} parent=15 // pred_region
          %s248 = smul.u32 2, %s22
          %p249 = scmp.lt.s32.totalorder %s21, 1
          %s250 = scalar_select %p249, %s21, 1
          %p251 = scmp.lt.s32.totalorder %s248, 1
          %s252 = scalar_select %p251, %s248, 1
          %s253 = smul.addr %s250, 2
          %s254 = sadd.s32 %s252, %s253
          %s255 = smul.addr %s254, 8
          %s256 = scalar_lea.vmem %s3, %s255
          %s257 = smul.u32 2, %s22
        $region32: #{tpu_custom_call.1} parent=15 // pred_fallthru
          _
        // Predicated region
        $region33: #{tpu_custom_call.1} parent=15 // pred_check
          %p258 = pneg %p163
        $region34: #{tpu_custom_call.1} parent=15 // pred_check_branch
          %260 = sbr.rel (%p258) target = $region36
        $region35: #{tpu_custom_call.1} parent=15 // pred_region
          %s261 = smul.u32 2, %s22
          %p262 = scmp.lt.s32.totalorder %s21, 1
          %s263 = scalar_select %p262, %s21, 1
          %p264 = scmp.lt.s32.totalorder %s261, 1
          %s265 = scalar_select %p264, %s261, 1
          %s266 = smul.addr %s263, 2
          %s267 = sadd.s32 %s265, %s266
          %s268 = smul.addr %s267, 8
          %s269 = scalar_lea.vmem %s4, %s268
          %s270 = smul.u32 2, %s22
        $region36: #{tpu_custom_call.1} parent=15 // pred_fallthru
          _
      $region16: #{tpu_custom_call.1} parent=5 // pred_fallthru
        _
      %p271 = scmp.le.s32.totalorder 1, %s14
      %p272 = scmp.lt.s32.totalorder %s14, 9
      %p273 = pnand %p271, %p272
      %p274 = pneg %p273
      // Predicated region
      $region37: #{tpu_custom_call.1} parent=5 // pred_check
        _
      $region38: #{tpu_custom_call.1} parent=5 // pred_check_branch
        %276 = sbr.rel (%p273) target = $region40
      $region39: #{tpu_custom_call.1} parent=5 // pred_region
        %s277 = ssub.s32 %s14, 1
        %s278 = smul.u32 2, %s25
        %p279 = scmp.lt.s32.totalorder %s24, 1
        %s280 = scalar_select %p279, %s24, 1
        %p281 = scmp.lt.s32.totalorder %s278, 1
        %s282 = scalar_select %p281, %s278, 1
        %s283 = smul.addr %s280, 2
        %s284 = sadd.s32 %s282, %s283
        %s285 = smul.addr %s284, 4
        %s286 = scalar_lea.vmem %s0, %s285
        %p287 = pneg %p61
        %p288 = pneg %p58
        %p289 = scmp.lt.s32.totalorder %s26, 3
        %s290 = scalar_select %p289, %s26, 3
        %s291 = smul.addr %s290, 8
        %s292 = smul.addr %s291, 4
        %s293 = scalar_lea.vmem %s1, %s292
        %p294 = pneg %p87
        %p295 = pneg %p84
        %p296 = scmp.lt.s32.totalorder %s26, 3
        %s297 = scalar_select %p296, %s26, 3
        %s298 = scalar_lea.vmem %s2, %s297
        %p299 = pneg %p113
        %p300 = pneg %p110
        %s301 = smul.u32 2, %s25
        %p302 = scmp.lt.s32.totalorder %s24, 1
        %s303 = scalar_select %p302, %s24, 1
        %p304 = scmp.lt.s32.totalorder %s301, 1
        %s305 = scalar_select %p304, %s301, 1
        %s306 = smul.addr %s303, 2
        %s307 = sadd.s32 %s305, %s306
        %s308 = smul.addr %s307, 8
        %s309 = scalar_lea.vmem %s3, %s308
        %p310 = pneg %p141
        %p311 = pneg %p138
        %s312 = smul.u32 2, %s25
        %p313 = scmp.lt.s32.totalorder %s24, 1
        %s314 = scalar_select %p313, %s24, 1
        %p315 = scmp.lt.s32.totalorder %s312, 1
        %s316 = scalar_select %p315, %s312, 1
        %s317 = smul.addr %s314, 2
        %s318 = sadd.s32 %s316, %s317
        %s319 = smul.addr %s318, 8
        %s320 = scalar_lea.vmem %s4, %s319
        %p321 = pneg %p169
        %p322 = pneg %p166
        %p323 = pneg %p199
        %p324 = pneg %p196
        %s325 = sand.u32 %s186, 1
        %s326 = scalar_lea.sflag [#allocation3], %s325
        %s327 = sand.u32 %s186, 1
        %s328 = smul.addr %s327, 16
        %s329 = scalar_lea.vmem [#allocation2], %s328
        %s330 = smul.u32 2, %s25
        %p331 = scmp.lt.s32.totalorder %s24, 1
        %s332 = scalar_select %p331, %s24, 1
        %p333 = scmp.lt.s32.totalorder %s330, 1
        %s334 = scalar_select %p333, %s330, 1
        %s335 = smul.addr %s332, 2
        %s336 = sadd.s32 %s334, %s335
        %s337 = smul.addr %s336, 4
        %s338 = scalar_lea.vmem %s0, %s337
        %s339 = smul.u32 2, %s25
        %p340 = scmp.lt.s32.totalorder %s26, 3
        %s341 = scalar_select %p340, %s26, 3
        %s342 = smul.addr %s341, 8
        %s343 = smul.addr %s342, 4
        %s344 = scalar_lea.vmem %s1, %s343
        %p345 = scmp.lt.s32.totalorder %s26, 3
        %s346 = scalar_select %p345, %s26, 3
        %s347 = scalar_lea.vmem %s2, %s346
        %s348 = smul.u32 2, %s25
        %p349 = scmp.lt.s32.totalorder %s24, 1
        %s350 = scalar_select %p349, %s24, 1
        %p351 = scmp.lt.s32.totalorder %s348, 1
        %s352 = scalar_select %p351, %s348, 1
        %s353 = smul.addr %s350, 2
        %s354 = sadd.s32 %s352, %s353
        %s355 = smul.addr %s354, 8
        %s356 = scalar_lea.vmem %s3, %s355
        %s357 = smul.u32 2, %s25
        %s358 = smul.u32 2, %s25
        %p359 = scmp.lt.s32.totalorder %s24, 1
        %s360 = scalar_select %p359, %s24, 1
        %p361 = scmp.lt.s32.totalorder %s358, 1
        %s362 = scalar_select %p361, %s358, 1
        %s363 = smul.addr %s360, 2
        %s364 = sadd.s32 %s362, %s363
        %s365 = smul.addr %s364, 8
        %s366 = scalar_lea.vmem %s4, %s365
        %s367 = smul.u32 2, %s25
        %s368 = smul.u32 2, %s26
        %s369 = smul.u32 2, %s25
        %v371 = vld [vmem:[%s338] sm:$0xf]
        %v372 = vld [vmem:[%s338 + $0x4] sm:$0xf]
        %v373 = vld [vmem:[%s344] sm:$0xf]
        %v374 = vld [vmem:[%s344 + $0x4] sm:$0xf]
        %v375 = vld [vmem:[%s344 + $0x8] sm:$0xf]
        %v376 = vld [vmem:[%s344 + $0xc] sm:$0xf]
        %v377 = vld [vmem:[%s344 + $0x10] sm:$0xf]
        %v378 = vld [vmem:[%s344 + $0x14] sm:$0xf]
        %v379 = vld [vmem:[%s344 + $0x18] sm:$0xf]
        %v380 = vld [vmem:[%s344 + $0x1c] sm:$0xf]
        %v381 = vld [vmem:[%s347] sm:$0x1]
        %v383 = vlaneseq
        %v384 = vshrl.u32 %v383, 7
        %v385 = vsub.s32 0, %v384
        %v386 = vrot.slane %v381, %v385
        %v390 = vunpack.c.l.b16 %v371
        %v391 = vunpack.c.l.b16 %v372
        %v392 = vpack.c.b16 %v391, %v390
        %v401 = vunpack.c.l.b16 %v373
        %v402 = vunpack.c.l.b16 %v374
        %v403 = vunpack.c.l.b16 %v375
        %v404 = vunpack.c.l.b16 %v376
        %v405 = vunpack.c.l.b16 %v377
        %v406 = vunpack.c.l.b16 %v378
        %v407 = vunpack.c.l.b16 %v379
        %v408 = vunpack.c.l.b16 %v380
        %v409 = vpack.c.b16 %v402, %v401
        %v410 = vpack.c.b16 %v404, %v403
        %v411 = vpack.c.b16 %v406, %v405
        %v412 = vpack.c.b16 %v408, %v407
        %vm417 = vcmask 523264
        %v419 = vsel %vm417, %v392, 0
        %421 = vmatprep.subr.bf16.mxu0 0
        %422 = vmatpush1.bf16.msra.mxu0 %v409
        %423 = vmatprep.subr.bf16.mxu0 0
        %424 = vmatpush1.bf16.msra.mxu0 %v410
        %425 = vmatprep.subr.bf16.mxu0 0
        %426 = vmatpush1.bf16.msra.mxu0 %v411
        %427 = vmatprep.subr.bf16.mxu0 0
        %428 = vmatpush1.bf16.msra.mxu0 %v412
        %429 = vmatprep.subr.bf16.mxu0 0
        %430 = vmatpush1.bf16.msra.mxu0 0
        %431 = vmatprep.subr.bf16.mxu0 0
        %432 = vmatpush1.bf16.msra.mxu0 0
        %433 = vmatprep.subr.bf16.mxu0 0
        %434 = vmatpush1.bf16.msra.mxu0 0
        %435 = vmatprep.subr.bf16.mxu0 0
        %436 = vmatpush1.bf16.msra.mxu0 0
        %437 = vmatprep.subr.bf16.mxu0 0
        %438 = vmatpush1.bf16.msra.mxu0 0
        %439 = vmatprep.subr.bf16.mxu0 0
        %440 = vmatpush1.bf16.msra.mxu0 0
        %441 = vmatprep.subr.bf16.mxu0 0
        %442 = vmatpush1.bf16.msra.mxu0 0
        %443 = vmatprep.subr.bf16.mxu0 0
        %444 = vmatpush1.bf16.msra.mxu0 0
        %445 = vmatprep.subr.bf16.mxu0 0
        %446 = vmatpush1.bf16.msra.mxu0 0
        %447 = vmatprep.subr.bf16.mxu0 0
        %448 = vmatpush1.bf16.msra.mxu0 0
        %449 = vmatprep.subr.bf16.mxu0 0
        %450 = vmatpush1.bf16.msra.mxu0 0
        %451 = vmatprep.subr.bf16.mxu0 0
        %452 = vmatpush1.bf16.msra.mxu0 0
        %453 = vmatprep.mubr.bf16.mxu0 0
        %454 = vmatmul.mubr.bf16.gmra.mrb[0].mxu0 %v419
        %v455 = vpop.f32.mrb[0].mxu0
        %v456 = vadd.f32 %v386, %v455
        %v457 = vpop.f32.mrb[0].mxu0
        %v458 = vpop.f32.mrb[0].mxu0
        %v459 = vadd.f32 %v386, %v458
        %v460 = vpop.f32.mrb[0].mxu0
        %461 = vdwg.mxu0
        %p462 = scmp.lt.s32.totalorder %s26, 3
        // Predicated region
        $region41: #{tpu_custom_call.1} parent=39 // pred_check
          %p463 = pneg %p462
        $region42: #{tpu_custom_call.1} parent=39 // pred_check_branch
          %465 = sbr.rel (%p463) target = $region44
        $region43: #{tpu_custom_call.1} parent=39 // pred_region
          %v466 = vld [vmem:[%s356] sm:$0xff]
          %v467 = vld [vmem:[%s356 + $0x8] sm:$0xff]
          %v468 = vld [vmem:[%s366] sm:$0xff]
          %v469 = vld [vmem:[%s366 + $0x8] sm:$0xff]
          %472 = vrot.lane.b32.xlu0 %v456, 120
          %v473 = vpop.permute.xlu0 %472
          %474 = vrot.lane.b32.xlu0 %v459, 120
          %v475 = vpop.permute.xlu0 %474
          %478 = vrot.lane.b32.xlu0 %v456, 8
          %v479 = vpop.permute.xlu0 %478
          %480 = vrot.lane.b32.xlu0 %v459, 8
          %v481 = vpop.permute.xlu0 %480
          %vm484 = vcmask 64512
          %v485 = vsel %vm484, %v473, %v479
          %v486 = vsel %vm484, %v475, %v481
          %v487 = vmul.f32 %v456, %v466
          %v488 = vmul.f32 %v459, %v467
          %v489 = vmul.f32 %v485, %v468
          %v490 = vmul.f32 %v486, %v469
          %v491 = vadd.f32 %v487, %v489
          %v492 = vadd.f32 %v488, %v490
          %v493 = vpack.c.bf16 %v492, %v491
          %v495 = vunpack.c.l.b16 %v493
          %v496 = vunpack.c.h.b16 %v493
          %v497 = vpack.c.b16 %v495, %v495
          %v498 = vpack.c.b16 %v496, %v496
          %vm501 = vcmask 125952
          %502 = vst.msk [vmem:[%s329] sm:$0xf] %vm501, %v497
          %503 = vst.msk [vmem:[%s329 + $0x4] sm:$0xf] %vm501, %v498
          %504 = vrot.lane.b32.xlu0 %v456, 104
          %v505 = vpop.permute.xlu0 %504
          %506 = vrot.lane.b32.xlu0 %v459, 104
          %v507 = vpop.permute.xlu0 %506
          %v510 = vsel %vm484, %v505, %v473
          %v511 = vsel %vm484, %v507, %v475
          %514 = vrot.lane.b32.xlu0 %v466, 16
          %v515 = vpop.permute.xlu0 %514
          %516 = vrot.lane.b32.xlu0 %v467, 16
          %v517 = vpop.permute.xlu0 %516
          %v520 = vmul.f32 %v456, %v515
          %v521 = vmul.f32 %v459, %v517
          %v522 = vmul.f32 %v510, %v468
          %v523 = vmul.f32 %v511, %v469
          %526 = vrot.lane.b32.xlu0 %v522, 16
          %v527 = vpop.permute.xlu0 %526
          %528 = vrot.lane.b32.xlu0 %v523, 16
          %v529 = vpop.permute.xlu0 %528
          %v532 = vadd.f32 %v520, %v527
          %v533 = vadd.f32 %v521, %v529
          %v534 = vpack.c.bf16 %v533, %v532
          %v536 = vunpack.c.l.b16 %v534
          %v537 = vunpack.c.h.b16 %v534
          %v538 = vpack.c.b16 %v536, %v536
          %v539 = vpack.c.b16 %v537, %v537
          %540 = vrot.lane.b32.xlu0 %v538, 112
          %v541 = vpop.permute.xlu0 %540
          %542 = vrot.lane.b32.xlu0 %v539, 112
          %v543 = vpop.permute.xlu0 %542
          %s546 = scalar_lea.vmem %s329, 8 [#allocation2]
          %547 = vst.msk [vmem:[%s546] sm:$0xf] %vm501, %v541
          %548 = vst.msk [vmem:[%s546 + $0x4] sm:$0xf] %vm501, %v543
        $region44: #{tpu_custom_call.1} parent=39 // pred_fallthru
          _
        %p549 = scmp.ge.s32.totalorder %s26, 3
        // Predicated region
        $region45: #{tpu_custom_call.1} parent=39 // pred_check
          %p550 = pneg %p549
        $region46: #{tpu_custom_call.1} parent=39 // pred_check_branch
          %552 = sbr.rel (%p550) target = $region48
        $region47: #{tpu_custom_call.1} parent=39 // pred_region
          %v553 = vpack.c.bf16 %v459, %v456
          %v555 = vunpack.c.l.b16 %v553
          %v556 = vunpack.c.h.b16 %v553
          %v557 = vpack.c.b16 %v555, %v555
          %v558 = vpack.c.b16 %v556, %v556
          %vm561 = vcmask 125952
          %562 = vst.msk [vmem:[%s329] sm:$0xf] %vm561, %v557
          %563 = vst.msk [vmem:[%s329 + $0x4] sm:$0xf] %vm561, %v558
          %564 = vrot.lane.b32.xlu0 %v557, 112
          %v565 = vpop.permute.xlu0 %564
          %566 = vrot.lane.b32.xlu0 %v558, 112
          %v567 = vpop.permute.xlu0 %566
          %s570 = scalar_lea.vmem %s329, 8 [#allocation2]
          %571 = vst.msk [vmem:[%s570] sm:$0xf] %vm561, %v565
          %572 = vst.msk [vmem:[%s570 + $0x4] sm:$0xf] %vm561, %v567
        $region48: #{tpu_custom_call.1} parent=39 // pred_fallthru
          _
        %s573 = sand.u32 %s186, 1
        %s574 = scalar_lea.sflag [#allocation3], %s573
        %s575 = sand.u32 %s186, 1
        %s576 = smul.addr %s575, 16
        %s577 = scalar_lea.vmem [#allocation2], %s576
        // Predicated region
        $region49: #{tpu_custom_call.1} parent=39 // pred_check
          %p578 = pneg %p196
        $region50: #{tpu_custom_call.1} parent=39 // pred_check_branch
          %580 = sbr.rel (%p578) target = $region52
        $region51: #{tpu_custom_call.1} parent=39 // pred_region
          %s581 = smul.u32 2, %s26
          %s582 = smul.u32 2, %s25
          %s584 = ssub.s32 256, 256
          %585 = vsyncadd %s574, %s584
          %s586 = smul.addr %s581, 2
          %s587 = sadd.s32 %s582, %s586
          %s588 = smul.addr %s24, 16
          %s589 = sadd.s32 %s587, %s588
          %s590 = smul.addr %s589, 64
          %s591 = scalar_lea.hbm %s5, %s590
          %s592 = sshll.u32 %s577, 4
          %s593 = int_to_ptr.vmem [resolvable:$true] %s592
          %598 = dma.vmem_to_hbm [thread:$0]  %s593, 256, %s591, %s574, 64, 64, 4
        $region52: #{tpu_custom_call.1} parent=39 // pred_fallthru
          _
      $region40: #{tpu_custom_call.1} parent=5 // pred_fallthru
        _
      %p599 = scmp.le.s32.totalorder 2, %s14
      // Predicated region
      $region53: #{tpu_custom_call.1} parent=5 // pred_check
        %p600 = pneg %p599
      $region54: #{tpu_custom_call.1} parent=5 // pred_check_branch
        %602 = sbr.rel (%p600) target = $region56
      $region55: #{tpu_custom_call.1} parent=5 // pred_region
        %s603 = ssub.s32 %s14, 2
        // Predicated region
        $region57: #{tpu_custom_call.1} parent=55 // pred_check
          %p604 = pneg %p202
        $region58: #{tpu_custom_call.1} parent=55 // pred_check_branch
          %606 = sbr.rel (%p604) target = $region60
        $region59: #{tpu_custom_call.1} parent=55 // pred_region
          %s607 = sand.u32 %s187, 1
          %s608 = scalar_lea.sflag [#allocation3], %s607
          %s609 = sand.u32 %s187, 1
          %s610 = smul.addr %s609, 16
          %s611 = scalar_lea.vmem [#allocation2], %s610
          %612 = dma.done %s608, 256
        $region60: #{tpu_custom_call.1} parent=55 // pred_fallthru
          _
      $region56: #{tpu_custom_call.1} parent=5 // pred_fallthru
        _
    $region6: #{tpu_custom_call.1} parent=1 // loop_footer
      %s18 = sadd.s32 1, %s14
    $region7: #{tpu_custom_call.1} parent=1 // loop_footer_branch
      %13 = sbr.rel target = $region3
    $region8: #{tpu_custom_call.1} parent=1 // loop_exit
      _
    %613 = vsyncpa [#allocation3], 1
    %s614 = scalar_lea.sflag [#allocation3], 1
    %615 = vsyncpa %s614, 1

</llo_original>
